<compile_context>
chip_gen: v7x
topology: tpu7x:2x2x1
jax: 0.10.0
libtpu: 0.0.40
codegen_flags: <defaults>
</compile_context>

<pallas_src>
import functools
import math

import jax
import jax.numpy as jnp
from jax import lax
from jax.experimental import pallas as pl
from jax.experimental.pallas import tpu as pltpu

HIDDEN = 16


def _dqn_kernel(x_ref, w1_ref, b1_ref, w2_ref, b2_ref, o_ref, *, row_chunk, n_chunks):
    # x_ref : (rb, pack*S)   packed samples, lane-dense
    # w1_ref: (pack*S, pack*H) block-diagonal, VMEM-resident
    # b1_ref: (1, pack*H)
    # w2_ref: (pack*H, pack*A) block-diagonal, VMEM-resident
    # b2_ref: (1, pack*A)
    # o_ref : (rb, pack*A)   packed outputs
    # Inner chunk loop keeps the (row_chunk, pack*H) f32 hidden temp small
    # while the DMA'd block (rb rows) stays large.
    def compute(r0):
        xb = x_ref[pl.ds(r0, row_chunk), :]
        h = jnp.dot(xb, w1_ref[...], preferred_element_type=jnp.float32)
        h = jnp.maximum(h + b1_ref[...], 0.0)
        out = jnp.dot(h, w2_ref[...], preferred_element_type=jnp.float32)
        o_ref[pl.ds(r0, row_chunk), :] = (out + b2_ref[...]).astype(o_ref.dtype)

    if n_chunks == 1:
        compute(0)
    else:
        def body(c, carry):
            compute(pl.multiple_of(c * row_chunk, row_chunk))
            return carry
        lax.fori_loop(0, n_chunks, body, None)


def _choose_pack(state_size, action_size, max_in_width=1024):
    # Smallest pack with pack*state_size % 128 == 0 (lane-dense input); also
    # make pack*action_size % 128 == 0 (lane-dense output) if the packed input
    # row stays reasonably narrow.
    p_in = 128 // math.gcd(128, state_size)
    p_out = 128 // math.gcd(128, action_size)
    p_both = p_in * p_out // math.gcd(p_in, p_out)
    return p_both if p_both * state_size <= max_in_width else p_in


def _pack_params(w1, b1, w2, b2, pack):
    """Block-diagonal packed weights/biases (tiny, ~1.5 MB).

    Hoist this out of the hot loop if the weights are reused across calls.
    """
    hidden, state_size = w1.shape
    action_size = w2.shape[0]
    eye = jnp.eye(pack, dtype=w1.dtype)
    w1b = jnp.einsum("pq,sj->psqj", eye, w1.T).reshape(pack * state_size, pack * hidden)
    w2b = jnp.einsum("pq,jk->pjqk", eye, w2.T).reshape(pack * hidden, pack * action_size)
    b1b = jnp.broadcast_to(b1.reshape(1, hidden), (pack, hidden)).reshape(1, pack * hidden)
    b2b = jnp.broadcast_to(b2.reshape(1, action_size), (pack, action_size)).reshape(1, pack * action_size)
    return w1b, b1b, w2b, b2b


def dqn_forward(x, w1, b1, w2, b2, *, row_block=8192, row_chunk=512,
                use_pallas=None, min_pallas_batch=4096):
    """PyTorch-equivalent forward: relu(x @ W1.T + b1) @ W2.T + b2.

    x: [batch, state_size]; w1: [16, state_size]; b1: [16];
    w2: [action_size, 16]; b2: [action_size].  Returns [batch, action_size].
    """
    batch, state_size = x.shape
    hidden = w1.shape[0]
    action_size = w2.shape[0]

    pack = _choose_pack(state_size, action_size)
    packable = (batch % pack == 0)
    if use_pallas is None:
        use_pallas = packable and batch >= min_pallas_batch
    if not (use_pallas and packable):
        # Small / awkward minibatches: fused XLA beats any pallas_call
        # (launch + pipeline overhead dominate at typical DQN batch sizes).
        return jnp.maximum(x @ w1.T + b1, 0.0) @ w2.T + b2

    rows = batch // pack
    wx = pack * state_size        # packed input width  (multiple of 128)
    wh = pack * hidden            # packed hidden width
    wo = pack * action_size       # packed output width

    xp = x.reshape(rows, wx)      # free row-major reshape: no HBM transpose/pad pass
    w1b, b1b, w2b, b2b = _pack_params(w1, b1, w2, b2, pack)

    # ---- tile sizing -----------------------------------------------------
    bytes_per = 4
    # Cap double-buffered x/out blocks at a v7x-safe budget (~36 MiB of its
    # 64 MiB physical VMEM), leaving room for the hidden chunk + weights.
    max_rb = max(8, ((36 << 20) // (2 * (wx + wo) * bytes_per)) // 8 * 8)
    rb = min(row_block, rows, max_rb)
    if rb < rows:
        rb = max(8, (rb // 8) * 8)            # sublane-aligned streamed tile
    rc = min(row_chunk, rb)
    if rb % rc != 0:
        rc = rb
    n_chunks = rb // rc
    grid = (pl.cdiv(rows, rb),)               # partial last block handled by Pallas masking

    vmem_need = (2 * rb * (wx + wo) + rc * wh) * bytes_per \
        + (wx * wh + wh * wo + wh + wo) * bytes_per + (2 << 20)
    vmem_limit = int(min(max(vmem_need, 32 << 20), 48 << 20))

    cost = pl.CostEstimate(
        # Block-diagonal packed matmuls: MXU does pack x the dense MACs.
        flops=2 * rows * (wx * wh + wh * wo),
        transcendentals=0,
        bytes_accessed=(rows * (wx + wo) + wx * wh + wh * wo + wh + wo) * bytes_per,
    )

    out_p = pl.pallas_call(
        functools.partial(_dqn_kernel, row_chunk=rc, n_chunks=n_chunks),
        out_shape=jax.ShapeDtypeStruct((rows, wo), jnp.float32),
        grid_spec=pltpu.PrefetchScalarGridSpec(
            num_scalar_prefetch=0,
            grid=grid,
            in_specs=[
                pl.BlockSpec((rb, wx), lambda i: (i, 0)),    # streamed x tile
                pl.BlockSpec((wx, wh), lambda i: (0, 0)),    # resident packed weights
                pl.BlockSpec((1, wh), lambda i: (0, 0)),
                pl.BlockSpec((wh, wo), lambda i: (0, 0)),
                pl.BlockSpec((1, wo), lambda i: (0, 0)),
            ],
            out_specs=pl.BlockSpec((rb, wo), lambda i: (i, 0)),
        ),
        compiler_params=pltpu.CompilerParams(
            dimension_semantics=("parallel",),   # disjoint blocks; megacore on v7x
            vmem_limit_bytes=vmem_limit,
        ),
        cost_estimate=cost,
    )(xp, w1b, b1b, w2b, b2b)

    # Free reshape back to the PyTorch layout [batch, action_size].
    return out_p.reshape(batch, action_size)


def init_params(key, state_size, action_size, hidden=HIDDEN):
    # nn.Linear default init: U(-1/sqrt(fan_in), 1/sqrt(fan_in)); PyTorch
    # orientation [out_features, in_features], 1-D biases.
    k1, k2, k3, k4 = jax.random.split(key, 4)
    bound1 = 1.0 / math.sqrt(state_size)
    bound2 = 1.0 / math.sqrt(hidden)
    w1 = jax.random.uniform(k1, (hidden, state_size), jnp.float32, -bound1, bound1)
    b1 = jax.random.uniform(k2, (hidden,), jnp.float32, -bound1, bound1)
    w2 = jax.random.uniform(k3, (action_size, hidden), jnp.float32, -bound2, bound2)
    b2 = jax.random.uniform(k4, (action_size,), jnp.float32, -bound2, bound2)
    return w1, b1, w2, b2


if __name__ == "__main__":
    state_size, action_size = 4, 2
    # pack = 64 for (S=4, A=2) -> 32 packed rows; the small row_block /
    # row_chunk below force a 2-step grid AND a 2-chunk inner loop so both
    # code paths of the kernel are exercised at a small total size.
    batch = 2048

    key = jax.random.PRNGKey(0)
    kx, kp = jax.random.split(key)
    x = jax.random.normal(kx, (batch, state_size), dtype=jnp.float32)
    w1, b1, w2, b2 = init_params(kp, state_size, action_size)

    fwd = jax.jit(functools.partial(dqn_forward, row_block=16, row_chunk=8,
                                    use_pallas=True))
    out = fwd(x, w1, b1, w2, b2)
    jax.block_until_ready(out)

    # Plain-JAX reference (PyTorch semantics).
    ref = jnp.maximum(x @ w1.T + b1, 0.0) @ w2.T + b2
    assert out.shape == (batch, action_size)
    assert jnp.allclose(out, ref, atol=1e-4, rtol=1e-4), \
        float(jnp.max(jnp.abs(out - ref)))

    # Small-minibatch path (plain fused XLA fallback) matches too.
    small = dqn_forward(x[:32], w1, b1, w2, b2)
    assert jnp.allclose(small, ref[:32], atol=1e-4, rtol=1e-4)

    print("KERNEL_OK")
</pallas_src>

<mosaic_0001>
module attributes {stable_mosaic.version = 11 : i64} {
  func.func @_dqn_kernel(%arg0: i32, %arg1: memref<16x256xf32, #tpu.memory_space<vmem>>, %arg2: memref<256x1024xf32, #tpu.memory_space<vmem>>, %arg3: memref<1x1024xf32, #tpu.memory_space<vmem>>, %arg4: memref<1024x128xf32, #tpu.memory_space<vmem>>, %arg5: memref<1x128xf32, #tpu.memory_space<vmem>>, %arg6: memref<16x128xf32, #tpu.memory_space<vmem>>) attributes {dimension_semantics = [#tpu.dimension_semantics<parallel>], iteration_bounds = array<i64: 2>, scalar_prefetch = 0 : i64, scratch_operands = 0 : i64, tpu.core_type = #tpu.core_type<tc>, window_params = [{transform_indices = @transform_0, window_bounds = array<i64: 16, 256>}, {pipeline_mode = #tpu.pipeline_mode<synchronous>, transform_indices = @transform_1, window_bounds = array<i64: 256, 1024>}, {pipeline_mode = #tpu.pipeline_mode<synchronous>, transform_indices = @transform_2, window_bounds = array<i64: 1, 1024>}, {pipeline_mode = #tpu.pipeline_mode<synchronous>, transform_indices = @transform_3, window_bounds = array<i64: 1024, 128>}, {pipeline_mode = #tpu.pipeline_mode<synchronous>, transform_indices = @transform_4, window_bounds = array<i64: 1, 128>}, {transform_indices = @transform_5, window_bounds = array<i64: 16, 128>}]} {
    %c0_i32 = arith.constant 0 : i32
    %c2_i32 = arith.constant 2 : i32
    %0 = arith.addi %c0_i32, %c2_i32 : i32
    %c1_i32 = arith.constant 1 : i32
    scf.for %arg7 = %c0_i32 to %0 step %c1_i32  : i32 {
      %c8_i32 = arith.constant 8 : i32
      %1 = arith.muli %arg7, %c8_i32 : i32
      %2 = tpu.assume_multiple %1, 8 : i32
      %3 = arith.index_cast %2 : i32 to index
      %c0 = arith.constant 0 : index
      %4 = vector.load %arg1[%3, %c0] : memref<16x256xf32, #tpu.memory_space<vmem>>, vector<8x256xf32>
      %c0_1 = arith.constant 0 : index
      %c0_2 = arith.constant 0 : index
      %5 = vector.load %arg2[%c0_1, %c0_2] : memref<256x1024xf32, #tpu.memory_space<vmem>>, vector<256x1024xf32>
      %cst = arith.constant dense<0.000000e+00> : vector<8x1024xf32>
      %6 = tpu.matmul %4, %5, %cst {dimension_numbers = #tpu.dot_dimension_numbers<[1], [0], [0], [1], [0, 0, 1, 1], [], []>} : vector<8x256xf32>, vector<256x1024xf32>, vector<8x1024xf32> -> vector<8x1024xf32>
      %c0_3 = arith.constant 0 : index
      %c0_4 = arith.constant 0 : index
      %7 = vector.load %arg3[%c0_3, %c0_4] : memref<1x1024xf32, #tpu.memory_space<vmem>>, vector<1x1024xf32>
      %8 = vector.broadcast %7 : vector<1x1024xf32> to vector<8x1024xf32>
      %9 = arith.addf %6, %8 : vector<8x1024xf32>
      %cst_5 = arith.constant 0.000000e+00 : f32
      %10 = vector.broadcast %cst_5 : f32 to vector<8x1024xf32>
      %11 = arith.maximumf %9, %10 : vector<8x1024xf32>
      %c0_6 = arith.constant 0 : index
      %c0_7 = arith.constant 0 : index
      %12 = vector.load %arg4[%c0_6, %c0_7] : memref<1024x128xf32, #tpu.memory_space<vmem>>, vector<1024x128xf32>
      %cst_8 = arith.constant dense<0.000000e+00> : vector<8x128xf32>
      %13 = tpu.matmul %11, %12, %cst_8 {dimension_numbers = #tpu.dot_dimension_numbers<[1], [0], [0], [1], [0, 0, 1, 1], [], []>} : vector<8x1024xf32>, vector<1024x128xf32>, vector<8x128xf32> -> vector<8x128xf32>
      %c0_9 = arith.constant 0 : index
      %c0_10 = arith.constant 0 : index
      %14 = vector.load %arg5[%c0_9, %c0_10] : memref<1x128xf32, #tpu.memory_space<vmem>>, vector<1x128xf32>
      %15 = vector.broadcast %14 : vector<1x128xf32> to vector<8x128xf32>
      %16 = arith.addf %13, %15 : vector<8x128xf32>
      %17 = arith.index_cast %2 : i32 to index
      %c0_11 = arith.constant 0 : index
      %18 = vector.load %arg6[%17, %c0_11] : memref<16x128xf32, #tpu.memory_space<vmem>>, vector<8x128xf32>
      tpu.vector_store %arg6[%17, %c0_11], %16 {strides = array<i32>} : memref<16x128xf32, #tpu.memory_space<vmem>>, vector<8x128xf32>,
    }
    %c2_i32_0 = arith.constant 2 : i32
    return
  }
  func.func @transform_0(%arg0: i32) -> (i32, i32) {
    %c0_i32 = arith.constant 0 : i32
    %c0_i32_0 = arith.constant 0 : i32
    return %arg0, %c0_i32 : i32, i32
  }
  func.func @transform_1(%arg0: i32) -> (i32, i32) {
    %c0_i32 = arith.constant 0 : i32
    %c0_i32_0 = arith.constant 0 : i32
    %c0_i32_1 = arith.constant 0 : i32
    return %c0_i32, %c0_i32_0 : i32, i32
  }
  func.func @transform_2(%arg0: i32) -> (i32, i32) {
    %c0_i32 = arith.constant 0 : i32
    %c0_i32_0 = arith.constant 0 : i32
    %c0_i32_1 = arith.constant 0 : i32
    return %c0_i32, %c0_i32_0 : i32, i32
  }
  func.func @transform_3(%arg0: i32) -> (i32, i32) {
    %c0_i32 = arith.constant 0 : i32
    %c0_i32_0 = arith.constant 0 : i32
    %c0_i32_1 = arith.constant 0 : i32
    return %c0_i32, %c0_i32_0 : i32, i32
  }
  func.func @transform_4(%arg0: i32) -> (i32, i32) {
    %c0_i32 = arith.constant 0 : i32
    %c0_i32_0 = arith.constant 0 : i32
    %c0_i32_1 = arith.constant 0 : i32
    return %c0_i32, %c0_i32_0 : i32, i32
  }
  func.func @transform_5(%arg0: i32) -> (i32, i32) {
    %c0_i32 = arith.constant 0 : i32
    %c0_i32_0 = arith.constant 0 : i32
    return %arg0, %c0_i32 : i32, i32
  }
}

</mosaic_0001>

<llo_original>
// kernel: dqn_forward.1
$region0: #{dqn_forward.1}
  #allocation0 [shape = 'u32[]', space=smem, size = 0x4, offset = 0x4, fixed_abs, tag = 'smem constant byte address 0x4 - core index']
  #allocation1 [shape = 'u32[144,128]{1,0:T(1,128)}', space=vmem, size = 0x12000, scoped, tag = 'internal scratch']
  %s0 = inlined_call_operand.vmem [shape: f32[32,256], index: 0, kind: input, shape index: {}]
  %s1 = inlined_call_operand.vmem [shape: f32[256,1024], index: 1, kind: input, shape index: {}]
  %s2 = inlined_call_operand.vmem [shape: f32[1,1024], index: 2, kind: input, shape index: {}]
  %s3 = inlined_call_operand.vmem [shape: f32[1024,128], index: 3, kind: input, shape index: {}]
  %s4 = inlined_call_operand.vmem [shape: f32[1,128], index: 4, kind: input, shape index: {}]
  %s5 = inlined_call_operand.vmem [shape: f32[32,128], index: 5, kind: output, shape index: {}]
  %s6 = sld [smem:[#allocation0]]
  $region60: #{dqn_forward.1} parent=0
    _
  %s8 = ssub.s32 1, %s6
  %s9 = scalar_select 0, %s8, %s6
  loop: start=0, step=1, limit=4
  $region2: #{dqn_forward.1} parent=0 // loop_pre_header
    _
  $region3: #{dqn_forward.1} parent=0 // loop_header
    %s11 = sphi 0, %s15
    %p12 = scmp.ge.s32.totalorder %s11, 4
    %s21 = sphi 0, %s23
    %s24 = sphi 0, %s21
    %s25 = sphi 0, %s24
    %s41 = sphi 0, %s25
    %s45 = sphi 0, %s45
    %s47 = sphi 0, %s45
    %s48 = sphi 0, %s47
    %s62 = sphi 0, %s48
    %s66 = sphi 0, %s66
    %s68 = sphi 0, %s66
    %s69 = sphi 0, %s68
    %s83 = sphi 0, %s69
    %s87 = sphi 0, %s87
    %s89 = sphi 0, %s87
    %s90 = sphi 0, %s89
    %s104 = sphi 0, %s90
    %s108 = sphi 0, %s108
    %s110 = sphi 0, %s108
    %s111 = sphi 0, %s110
    %s125 = sphi 0, %s111
    %s131 = sphi 0, %s133
    %s134 = sphi 0, %s131
    %s135 = sphi 0, %s134
    %s151 = sphi 0, %s135
  $region4: #{dqn_forward.1} parent=0 // loop_header_branch
    %14 = sbr.rel (%p12) target = $region8
  $region5: #{dqn_forward.1} parent=0 // loop_body
    %s16 = ssub.s32 %s11, 1
    %s17 = ssub.s32 %s11, 2
    %s18 = sadd.s32 %s11, 1
    %s19 = ssub.s32 %s11, %s18
    %p20 = scmp.eq.s32.totalorder %s19, 0
    %s22 = sadd.s32 %s21, 1
    %s23 = scalar_select %p20, %s21, %s22
    %p26 = pneg %p20
    %p27 = scmp.eq.s32.totalorder %s11, 1
    %p28 = por %p26, %p27
    %p29 = scmp.ne.s32.totalorder %s21, %s24
    %p30 = scmp.eq.s32.totalorder %s11, 0
    %p31 = por %p29, %p30
    %p32 = scmp.ne.s32.totalorder %s21, %s24
    %p33 = scmp.eq.s32.totalorder %s16, 1
    %p34 = por %p32, %p33
    %p35 = scmp.ne.s32.totalorder %s24, %s25
    %p36 = scmp.eq.s32.totalorder %s16, 0
    %p37 = por %p35, %p36
    %p38 = scmp.ne.s32.totalorder %s24, %s25
    %p39 = scmp.eq.s32.totalorder %s17, 1
    %p40 = por %p38, %p39
    %p42 = scmp.ne.s32.totalorder %s25, %s41
    %p43 = scmp.eq.s32.totalorder %s17, 0
    %p44 = por %p42, %p43
    %s46 = sadd.s32 %s45, 1
    %p49 = scmp.eq.s32.totalorder %s11, 1
    %p50 = scmp.ne.s32.totalorder %s45, %s47
    %p51 = scmp.eq.s32.totalorder %s11, 0
    %p52 = por %p50, %p51
    %p53 = scmp.ne.s32.totalorder %s45, %s47
    %p54 = scmp.eq.s32.totalorder %s16, 1
    %p55 = por %p53, %p54
    %p56 = scmp.ne.s32.totalorder %s47, %s48
    %p57 = scmp.eq.s32.totalorder %s16, 0
    %p58 = por %p56, %p57
    %p59 = scmp.ne.s32.totalorder %s47, %s48
    %p60 = scmp.eq.s32.totalorder %s17, 1
    %p61 = por %p59, %p60
    %p63 = scmp.ne.s32.totalorder %s48, %s62
    %p64 = scmp.eq.s32.totalorder %s17, 0
    %p65 = por %p63, %p64
    %s67 = sadd.s32 %s66, 1
    %p70 = scmp.eq.s32.totalorder %s11, 1
    %p71 = scmp.ne.s32.totalorder %s66, %s68
    %p72 = scmp.eq.s32.totalorder %s11, 0
    %p73 = por %p71, %p72
    %p74 = scmp.ne.s32.totalorder %s66, %s68
    %p75 = scmp.eq.s32.totalorder %s16, 1
    %p76 = por %p74, %p75
    %p77 = scmp.ne.s32.totalorder %s68, %s69
    %p78 = scmp.eq.s32.totalorder %s16, 0
    %p79 = por %p77, %p78
    %p80 = scmp.ne.s32.totalorder %s68, %s69
    %p81 = scmp.eq.s32.totalorder %s17, 1
    %p82 = por %p80, %p81
    %p84 = scmp.ne.s32.totalorder %s69, %s83
    %p85 = scmp.eq.s32.totalorder %s17, 0
    %p86 = por %p84, %p85
    %s88 = sadd.s32 %s87, 1
    %p91 = scmp.eq.s32.totalorder %s11, 1
    %p92 = scmp.ne.s32.totalorder %s87, %s89
    %p93 = scmp.eq.s32.totalorder %s11, 0
    %p94 = por %p92, %p93
    %p95 = scmp.ne.s32.totalorder %s87, %s89
    %p96 = scmp.eq.s32.totalorder %s16, 1
    %p97 = por %p95, %p96
    %p98 = scmp.ne.s32.totalorder %s89, %s90
    %p99 = scmp.eq.s32.totalorder %s16, 0
    %p100 = por %p98, %p99
    %p101 = scmp.ne.s32.totalorder %s89, %s90
    %p102 = scmp.eq.s32.totalorder %s17, 1
    %p103 = por %p101, %p102
    %p105 = scmp.ne.s32.totalorder %s90, %s104
    %p106 = scmp.eq.s32.totalorder %s17, 0
    %p107 = por %p105, %p106
    %s109 = sadd.s32 %s108, 1
    %p112 = scmp.eq.s32.totalorder %s11, 1
    %p113 = scmp.ne.s32.totalorder %s108, %s110
    %p114 = scmp.eq.s32.totalorder %s11, 0
    %p115 = por %p113, %p114
    %p116 = scmp.ne.s32.totalorder %s108, %s110
    %p117 = scmp.eq.s32.totalorder %s16, 1
    %p118 = por %p116, %p117
    %p119 = scmp.ne.s32.totalorder %s110, %s111
    %p120 = scmp.eq.s32.totalorder %s16, 0
    %p121 = por %p119, %p120
    %p122 = scmp.ne.s32.totalorder %s110, %s111
    %p123 = scmp.eq.s32.totalorder %s17, 1
    %p124 = por %p122, %p123
    %p126 = scmp.ne.s32.totalorder %s111, %s125
    %p127 = scmp.eq.s32.totalorder %s17, 0
    %p128 = por %p126, %p127
    %s129 = ssub.s32 %s11, %s18
    %p130 = scmp.eq.s32.totalorder %s129, 0
    %s132 = sadd.s32 %s131, 1
    %s133 = scalar_select %p130, %s131, %s132
    %p136 = pneg %p130
    %p137 = scmp.eq.s32.totalorder %s11, 1
    %p138 = por %p136, %p137
    %p139 = scmp.ne.s32.totalorder %s131, %s134
    %p140 = scmp.eq.s32.totalorder %s11, 0
    %p141 = por %p139, %p140
    %p142 = scmp.ne.s32.totalorder %s131, %s134
    %p143 = scmp.eq.s32.totalorder %s16, 1
    %p144 = por %p142, %p143
    %p145 = scmp.ne.s32.totalorder %s134, %s135
    %p146 = scmp.eq.s32.totalorder %s16, 0
    %p147 = por %p145, %p146
    %p148 = scmp.ne.s32.totalorder %s134, %s135
    %p149 = scmp.eq.s32.totalorder %s17, 1
    %p150 = por %p148, %p149
    %p152 = scmp.ne.s32.totalorder %s135, %s151
    %p153 = scmp.eq.s32.totalorder %s17, 0
    %p154 = por %p152, %p153
    %p155 = scmp.le.s32.totalorder 1, %s11
    %p156 = scmp.lt.s32.totalorder %s11, 3
    %p157 = pnand %p155, %p156
    %p158 = pneg %p157
    // Predicated region
    $region9: #{dqn_forward.1} parent=5 // pred_check
      _
    $region10: #{dqn_forward.1} parent=5 // pred_check_branch
      %160 = sbr.rel (%p157) target = $region12
    $region11: #{dqn_forward.1} parent=5 // pred_region
      %s161 = ssub.s32 %s11, 1
      // Predicated region
      $region13: #{dqn_forward.1} parent=11 // pred_check
        %p162 = pneg %p58
      $region14: #{dqn_forward.1} parent=11 // pred_check_branch
        %164 = sbr.rel (%p162) target = $region16
      $region15: #{dqn_forward.1} parent=11 // pred_region
        _
      $region16: #{dqn_forward.1} parent=11 // pred_fallthru
        _
      // Predicated region
      $region17: #{dqn_forward.1} parent=11 // pred_check
        %p165 = pneg %p79
      $region18: #{dqn_forward.1} parent=11 // pred_check_branch
        %167 = sbr.rel (%p165) target = $region20
      $region19: #{dqn_forward.1} parent=11 // pred_region
        _
      $region20: #{dqn_forward.1} parent=11 // pred_fallthru
        _
      // Predicated region
      $region21: #{dqn_forward.1} parent=11 // pred_check
        %p168 = pneg %p100
      $region22: #{dqn_forward.1} parent=11 // pred_check_branch
        %170 = sbr.rel (%p168) target = $region24
      $region23: #{dqn_forward.1} parent=11 // pred_region
        _
      $region24: #{dqn_forward.1} parent=11 // pred_fallthru
        _
      // Predicated region
      $region25: #{dqn_forward.1} parent=11 // pred_check
        %p171 = pneg %p121
      $region26: #{dqn_forward.1} parent=11 // pred_check_branch
        %173 = sbr.rel (%p171) target = $region28
      $region27: #{dqn_forward.1} parent=11 // pred_region
        _
      $region28: #{dqn_forward.1} parent=11 // pred_fallthru
        _
    $region12: #{dqn_forward.1} parent=5 // pred_fallthru
      _
    %p174 = scmp.lt.s32.totalorder %s11, 2
    // Predicated region
    $region29: #{dqn_forward.1} parent=5 // pred_check
      %p175 = pneg %p174
    $region30: #{dqn_forward.1} parent=5 // pred_check_branch
      %177 = sbr.rel (%p175) target = $region32
    $region31: #{dqn_forward.1} parent=5 // pred_region
      // Predicated region
      $region33: #{dqn_forward.1} parent=31 // pred_check
        %p178 = pneg %p31
      $region34: #{dqn_forward.1} parent=31 // pred_check_branch
        %180 = sbr.rel (%p178) target = $region36
      $region35: #{dqn_forward.1} parent=31 // pred_region
        %s181 = smul.u32 2, %s11
        %p182 = scmp.lt.s32.totalorder %s181, 3
        %s183 = scalar_select %p182, %s181, 3
        %s184 = smul.addr %s183, 2
        %s185 = smul.addr %s184, 8
        %s186 = scalar_lea.vmem %s0, %s185
        %s187 = smul.u32 2, %s11
      $region36: #{dqn_forward.1} parent=31 // pred_fallthru
        _
    $region32: #{dqn_forward.1} parent=5 // pred_fallthru
      _
    %p188 = scmp.le.s32.totalorder 1, %s11
    %p189 = scmp.lt.s32.totalorder %s11, 3
    %p190 = pnand %p188, %p189
    %p191 = pneg %p190
    // Predicated region
    $region37: #{dqn_forward.1} parent=5 // pred_check
      _
    $region38: #{dqn_forward.1} parent=5 // pred_check_branch
      %193 = sbr.rel (%p190) target = $region40
    $region39: #{dqn_forward.1} parent=5 // pred_region
      %s194 = ssub.s32 %s11, 1
      %s195 = smul.u32 2, %s16
      %p196 = scmp.lt.s32.totalorder %s195, 3
      %s197 = scalar_select %p196, %s195, 3
      %s198 = smul.addr %s197, 2
      %s199 = smul.addr %s198, 8
      %s200 = scalar_lea.vmem %s0, %s199
      %p201 = pneg %p37
      %p202 = pneg %p34
      %p203 = pneg %p58
      %p204 = pneg %p55
      %p205 = pneg %p79
      %p206 = pneg %p76
      %p207 = pneg %p100
      %p208 = pneg %p97
      %p209 = pneg %p121
      %p210 = pneg %p118
      %p211 = pneg %p147
      %p212 = pneg %p144
      %s213 = smul.u32 2, %s16
      %p214 = scmp.lt.s32.totalorder %s213, 3
      %s215 = scalar_select %p214, %s213, 3
      %s216 = smul.addr %s215, 8
      %s217 = scalar_lea.vmem %s5, %s216
      %s218 = smul.u32 2, %s16
      %p219 = scmp.lt.s32.totalorder %s218, 3
      %s220 = scalar_select %p219, %s218, 3
      %s221 = smul.addr %s220, 2
      %s222 = smul.addr %s221, 8
      %s223 = scalar_lea.vmem %s0, %s222
      %s224 = smul.u32 2, %s16
      %s225 = smul.u32 2, %s16
      %p226 = scmp.lt.s32.totalorder %s225, 3
      %s227 = scalar_select %p226, %s225, 3
      %s228 = smul.addr %s227, 8
      %s229 = scalar_lea.vmem %s5, %s228
      %s230 = smul.u32 2, %s16
      loop: start=0, step=1, limit=2
      $region41: #{dqn_forward.1} parent=39 // loop_pre_header
        _
      $region42: #{dqn_forward.1} parent=39 // loop_header
        %s232 = sphi 0, %s236
        %p233 = scmp.ge.s32.totalorder %s232, 2
      $region43: #{dqn_forward.1} parent=39 // loop_header_branch
        %235 = sbr.rel (%p233) target = $region47
      $region44: #{dqn_forward.1} parent=39 // loop_body
        %s237 = smul.u32 %s232, 8
        %s238 = sshra.s32 %s237, 3
        %s239 = sand.u32 %s237, 7
        %s240 = smul.u32 %s238, 2
        %s241 = smul.addr %s240, 8
        %s242 = scalar_lea.vmem %s223, %s241
        %v243 = vld [vmem:[%s242] sm:$0xff]
        %v244 = vld [vmem:[%s242 + $0x8] sm:$0xff]
        %v245 = vld [vmem:[%s1] sm:$0xff]
        %v246 = vld [vmem:[%s1 + $0x8] sm:$0xff]
        %v247 = vld [vmem:[%s1 + $0x10] sm:$0xff]
        %v248 = vld [vmem:[%s1 + $0x18] sm:$0xff]
        %v249 = vld [vmem:[%s1 + $0x20] sm:$0xff]
        %v250 = vld [vmem:[%s1 + $0x28] sm:$0xff]
        %v251 = vld [vmem:[%s1 + $0x30] sm:$0xff]
        %v252 = vld [vmem:[%s1 + $0x38] sm:$0xff]
        %v253 = vld [vmem:[%s1 + $0x40] sm:$0xff]
        %v254 = vld [vmem:[%s1 + $0x48] sm:$0xff]
        %v255 = vld [vmem:[%s1 + $0x50] sm:$0xff]
        %v256 = vld [vmem:[%s1 + $0x58] sm:$0xff]
        %v257 = vld [vmem:[%s1 + $0x60] sm:$0xff]
        %v258 = vld [vmem:[%s1 + $0x68] sm:$0xff]
        %v259 = vld [vmem:[%s1 + $0x70] sm:$0xff]
        %v260 = vld [vmem:[%s1 + $0x78] sm:$0xff]
        %v261 = vld [vmem:[%s1 + $0x80] sm:$0xff]
        %v262 = vld [vmem:[%s1 + $0x88] sm:$0xff]
        %v263 = vld [vmem:[%s1 + $0x90] sm:$0xff]
        %v264 = vld [vmem:[%s1 + $0x98] sm:$0xff]
        %v265 = vld [vmem:[%s1 + $0xa0] sm:$0xff]
        %v266 = vld [vmem:[%s1 + $0xa8] sm:$0xff]
        %v267 = vld [vmem:[%s1 + $0xb0] sm:$0xff]
        %v268 = vld [vmem:[%s1 + $0xb8] sm:$0xff]
        %v269 = vld [vmem:[%s1 + $0xc0] sm:$0xff]
        %v270 = vld [vmem:[%s1 + $0xc8] sm:$0xff]
        %v271 = vld [vmem:[%s1 + $0xd0] sm:$0xff]
        %v272 = vld [vmem:[%s1 + $0xd8] sm:$0xff]
        %v273 = vld [vmem:[%s1 + $0xe0] sm:$0xff]
        %v274 = vld [vmem:[%s1 + $0xe8] sm:$0xff]
        %v275 = vld [vmem:[%s1 + $0xf0] sm:$0xff]
        %v276 = vld [vmem:[%s1 + $0xf8] sm:$0xff]
        %v277 = vld [vmem:[%s1 + $0x100] sm:$0xff]
        %v278 = vld [vmem:[%s1 + $0x108] sm:$0xff]
        %v279 = vld [vmem:[%s1 + $0x110] sm:$0xff]
        %v280 = vld [vmem:[%s1 + $0x118] sm:$0xff]
        %v281 = vld [vmem:[%s1 + $0x120] sm:$0xff]
        %v282 = vld [vmem:[%s1 + $0x128] sm:$0xff]
        %v283 = vld [vmem:[%s1 + $0x130] sm:$0xff]
        %v284 = vld [vmem:[%s1 + $0x138] sm:$0xff]
        %v285 = vld [vmem:[%s1 + $0x140] sm:$0xff]
        %v286 = vld [vmem:[%s1 + $0x148] sm:$0xff]
        %v287 = vld [vmem:[%s1 + $0x150] sm:$0xff]
        %v288 = vld [vmem:[%s1 + $0x158] sm:$0xff]
        %v289 = vld [vmem:[%s1 + $0x160] sm:$0xff]
        %v290 = vld [vmem:[%s1 + $0x168] sm:$0xff]
        %v291 = vld [vmem:[%s1 + $0x170] sm:$0xff]
        %v292 = vld [vmem:[%s1 + $0x178] sm:$0xff]
        %v293 = vld [vmem:[%s1 + $0x180] sm:$0xff]
        %v294 = vld [vmem:[%s1 + $0x188] sm:$0xff]
        %v295 = vld [vmem:[%s1 + $0x190] sm:$0xff]
        %v296 = vld [vmem:[%s1 + $0x198] sm:$0xff]
        %v297 = vld [vmem:[%s1 + $0x1a0] sm:$0xff]
        %v298 = vld [vmem:[%s1 + $0x1a8] sm:$0xff]
        %v299 = vld [vmem:[%s1 + $0x1b0] sm:$0xff]
        %v300 = vld [vmem:[%s1 + $0x1b8] sm:$0xff]
        %v301 = vld [vmem:[%s1 + $0x1c0] sm:$0xff]
        %v302 = vld [vmem:[%s1 + $0x1c8] sm:$0xff]
        %v303 = vld [vmem:[%s1 + $0x1d0] sm:$0xff]
        %v304 = vld [vmem:[%s1 + $0x1d8] sm:$0xff]
        %v305 = vld [vmem:[%s1 + $0x1e0] sm:$0xff]
        %v306 = vld [vmem:[%s1 + $0x1e8] sm:$0xff]
        %v307 = vld [vmem:[%s1 + $0x1f0] sm:$0xff]
        %v308 = vld [vmem:[%s1 + $0x1f8] sm:$0xff]
        %v309 = vld [vmem:[%s1 + $0x200] sm:$0xff]
        %v310 = vld [vmem:[%s1 + $0x208] sm:$0xff]
        %v311 = vld [vmem:[%s1 + $0x210] sm:$0xff]
        %v312 = vld [vmem:[%s1 + $0x218] sm:$0xff]
        %v313 = vld [vmem:[%s1 + $0x220] sm:$0xff]
        %v314 = vld [vmem:[%s1 + $0x228] sm:$0xff]
        %v315 = vld [vmem:[%s1 + $0x230] sm:$0xff]
        %v316 = vld [vmem:[%s1 + $0x238] sm:$0xff]
        %v317 = vld [vmem:[%s1 + $0x240] sm:$0xff]
        %v318 = vld [vmem:[%s1 + $0x248] sm:$0xff]
        %v319 = vld [vmem:[%s1 + $0x250] sm:$0xff]
        %v320 = vld [vmem:[%s1 + $0x258] sm:$0xff]
        %v321 = vld [vmem:[%s1 + $0x260] sm:$0xff]
        %v322 = vld [vmem:[%s1 + $0x268] sm:$0xff]
        %v323 = vld [vmem:[%s1 + $0x270] sm:$0xff]
        %v324 = vld [vmem:[%s1 + $0x278] sm:$0xff]
        %v325 = vld [vmem:[%s1 + $0x280] sm:$0xff]
        %v326 = vld [vmem:[%s1 + $0x288] sm:$0xff]
        %v327 = vld [vmem:[%s1 + $0x290] sm:$0xff]
        %v328 = vld [vmem:[%s1 + $0x298] sm:$0xff]
        %v329 = vld [vmem:[%s1 + $0x2a0] sm:$0xff]
        %v330 = vld [vmem:[%s1 + $0x2a8] sm:$0xff]
        %v331 = vld [vmem:[%s1 + $0x2b0] sm:$0xff]
        %v332 = vld [vmem:[%s1 + $0x2b8] sm:$0xff]
        %v333 = vld [vmem:[%s1 + $0x2c0] sm:$0xff]
        %v334 = vld [vmem:[%s1 + $0x2c8] sm:$0xff]
        %v335 = vld [vmem:[%s1 + $0x2d0] sm:$0xff]
        %v336 = vld [vmem:[%s1 + $0x2d8] sm:$0xff]
        %v337 = vld [vmem:[%s1 + $0x2e0] sm:$0xff]
        %v338 = vld [vmem:[%s1 + $0x2e8] sm:$0xff]
        %v339 = vld [vmem:[%s1 + $0x2f0] sm:$0xff]
        %v340 = vld [vmem:[%s1 + $0x2f8] sm:$0xff]
        %v341 = vld [vmem:[%s1 + $0x300] sm:$0xff]
        %v342 = vld [vmem:[%s1 + $0x308] sm:$0xff]
        %v343 = vld [vmem:[%s1 + $0x310] sm:$0xff]
        %v344 = vld [vmem:[%s1 + $0x318] sm:$0xff]
        %v345 = vld [vmem:[%s1 + $0x320] sm:$0xff]
        %v346 = vld [vmem:[%s1 + $0x328] sm:$0xff]
        %v347 = vld [vmem:[%s1 + $0x330] sm:$0xff]
        %v348 = vld [vmem:[%s1 + $0x338] sm:$0xff]
        %v349 = vld [vmem:[%s1 + $0x340] sm:$0xff]
        %v350 = vld [vmem:[%s1 + $0x348] sm:$0xff]
        %v351 = vld [vmem:[%s1 + $0x350] sm:$0xff]
        %v352 = vld [vmem:[%s1 + $0x358] sm:$0xff]
        %v353 = vld [vmem:[%s1 + $0x360] sm:$0xff]
        %v354 = vld [vmem:[%s1 + $0x368] sm:$0xff]
        %v355 = vld [vmem:[%s1 + $0x370] sm:$0xff]
        %v356 = vld [vmem:[%s1 + $0x378] sm:$0xff]
        %v357 = vld [vmem:[%s1 + $0x380] sm:$0xff]
        %v358 = vld [vmem:[%s1 + $0x388] sm:$0xff]
        %v359 = vld [vmem:[%s1 + $0x390] sm:$0xff]
        %v360 = vld [vmem:[%s1 + $0x398] sm:$0xff]
        %v361 = vld [vmem:[%s1 + $0x3a0] sm:$0xff]
        %v362 = vld [vmem:[%s1 + $0x3a8] sm:$0xff]
        %v363 = vld [vmem:[%s1 + $0x3b0] sm:$0xff]
        %v364 = vld [vmem:[%s1 + $0x3b8] sm:$0xff]
        %v365 = vld [vmem:[%s1 + $0x3c0] sm:$0xff]
        %v366 = vld [vmem:[%s1 + $0x3c8] sm:$0xff]
        %v367 = vld [vmem:[%s1 + $0x3d0] sm:$0xff]
        %v368 = vld [vmem:[%s1 + $0x3d8] sm:$0xff]
        %v369 = vld [vmem:[%s1 + $0x3e0] sm:$0xff]
        %v370 = vld [vmem:[%s1 + $0x3e8] sm:$0xff]
        %v371 = vld [vmem:[%s1 + $0x3f0] sm:$0xff]
        %v372 = vld [vmem:[%s1 + $0x3f8] sm:$0xff]
        %v373 = vld [vmem:[%s1 + $0x400] sm:$0xff]
        %v374 = vld [vmem:[%s1 + $0x408] sm:$0xff]
        %v375 = vld [vmem:[%s1 + $0x410] sm:$0xff]
        %v376 = vld [vmem:[%s1 + $0x418] sm:$0xff]
        %v377 = vld [vmem:[%s1 + $0x420] sm:$0xff]
        %v378 = vld [vmem:[%s1 + $0x428] sm:$0xff]
        %v379 = vld [vmem:[%s1 + $0x430] sm:$0xff]
        %v380 = vld [vmem:[%s1 + $0x438] sm:$0xff]
        %v381 = vld [vmem:[%s1 + $0x440] sm:$0xff]
        %v382 = vld [vmem:[%s1 + $0x448] sm:$0xff]
        %v383 = vld [vmem:[%s1 + $0x450] sm:$0xff]
        %v384 = vld [vmem:[%s1 + $0x458] sm:$0xff]
        %v385 = vld [vmem:[%s1 + $0x460] sm:$0xff]
        %v386 = vld [vmem:[%s1 + $0x468] sm:$0xff]
        %v387 = vld [vmem:[%s1 + $0x470] sm:$0xff]
        %v388 = vld [vmem:[%s1 + $0x478] sm:$0xff]
        %v389 = vld [vmem:[%s1 + $0x480] sm:$0xff]
        %v390 = vld [vmem:[%s1 + $0x488] sm:$0xff]
        %v391 = vld [vmem:[%s1 + $0x490] sm:$0xff]
        %v392 = vld [vmem:[%s1 + $0x498] sm:$0xff]
        %v393 = vld [vmem:[%s1 + $0x4a0] sm:$0xff]
        %v394 = vld [vmem:[%s1 + $0x4a8] sm:$0xff]
        %v395 = vld [vmem:[%s1 + $0x4b0] sm:$0xff]
        %v396 = vld [vmem:[%s1 + $0x4b8] sm:$0xff]
        %v397 = vld [vmem:[%s1 + $0x4c0] sm:$0xff]
        %v398 = vld [vmem:[%s1 + $0x4c8] sm:$0xff]
        %v399 = vld [vmem:[%s1 + $0x4d0] sm:$0xff]
        %v400 = vld [vmem:[%s1 + $0x4d8] sm:$0xff]
        %v401 = vld [vmem:[%s1 + $0x4e0] sm:$0xff]
        %v402 = vld [vmem:[%s1 + $0x4e8] sm:$0xff]
        %v403 = vld [vmem:[%s1 + $0x4f0] sm:$0xff]
        %v404 = vld [vmem:[%s1 + $0x4f8] sm:$0xff]
        %v405 = vld [vmem:[%s1 + $0x500] sm:$0xff]
        %v406 = vld [vmem:[%s1 + $0x508] sm:$0xff]
        %v407 = vld [vmem:[%s1 + $0x510] sm:$0xff]
        %v408 = vld [vmem:[%s1 + $0x518] sm:$0xff]
        %v409 = vld [vmem:[%s1 + $0x520] sm:$0xff]
        %v410 = vld [vmem:[%s1 + $0x528] sm:$0xff]
        %v411 = vld [vmem:[%s1 + $0x530] sm:$0xff]
        %v412 = vld [vmem:[%s1 + $0x538] sm:$0xff]
        %v413 = vld [vmem:[%s1 + $0x540] sm:$0xff]
        %v414 = vld [vmem:[%s1 + $0x548] sm:$0xff]
        %v415 = vld [vmem:[%s1 + $0x550] sm:$0xff]
        %v416 = vld [vmem:[%s1 + $0x558] sm:$0xff]
        %v417 = vld [vmem:[%s1 + $0x560] sm:$0xff]
        %v418 = vld [vmem:[%s1 + $0x568] sm:$0xff]
        %v419 = vld [vmem:[%s1 + $0x570] sm:$0xff]
        %v420 = vld [vmem:[%s1 + $0x578] sm:$0xff]
        %v421 = vld [vmem:[%s1 + $0x580] sm:$0xff]
        %v422 = vld [vmem:[%s1 + $0x588] sm:$0xff]
        %v423 = vld [vmem:[%s1 + $0x590] sm:$0xff]
        %v424 = vld [vmem:[%s1 + $0x598] sm:$0xff]
        %v425 = vld [vmem:[%s1 + $0x5a0] sm:$0xff]
        %v426 = vld [vmem:[%s1 + $0x5a8] sm:$0xff]
        %v427 = vld [vmem:[%s1 + $0x5b0] sm:$0xff]
        %v428 = vld [vmem:[%s1 + $0x5b8] sm:$0xff]
        %v429 = vld [vmem:[%s1 + $0x5c0] sm:$0xff]
        %v430 = vld [vmem:[%s1 + $0x5c8] sm:$0xff]
        %v431 = vld [vmem:[%s1 + $0x5d0] sm:$0xff]
        %v432 = vld [vmem:[%s1 + $0x5d8] sm:$0xff]
        %v433 = vld [vmem:[%s1 + $0x5e0] sm:$0xff]
        %v434 = vld [vmem:[%s1 + $0x5e8] sm:$0xff]
        %v435 = vld [vmem:[%s1 + $0x5f0] sm:$0xff]
        %v436 = vld [vmem:[%s1 + $0x5f8] sm:$0xff]
        %v437 = vld [vmem:[%s1 + $0x600] sm:$0xff]
        %v438 = vld [vmem:[%s1 + $0x608] sm:$0xff]
        %v439 = vld [vmem:[%s1 + $0x610] sm:$0xff]
        %v440 = vld [vmem:[%s1 + $0x618] sm:$0xff]
        %v441 = vld [vmem:[%s1 + $0x620] sm:$0xff]
        %v442 = vld [vmem:[%s1 + $0x628] sm:$0xff]
        %v443 = vld [vmem:[%s1 + $0x630] sm:$0xff]
        %v444 = vld [vmem:[%s1 + $0x638] sm:$0xff]
        %v445 = vld [vmem:[%s1 + $0x640] sm:$0xff]
        %v446 = vld [vmem:[%s1 + $0x648] sm:$0xff]
        %v447 = vld [vmem:[%s1 + $0x650] sm:$0xff]
        %v448 = vld [vmem:[%s1 + $0x658] sm:$0xff]
        %v449 = vld [vmem:[%s1 + $0x660] sm:$0xff]
        %v450 = vld [vmem:[%s1 + $0x668] sm:$0xff]
        %v451 = vld [vmem:[%s1 + $0x670] sm:$0xff]
        %v452 = vld [vmem:[%s1 + $0x678] sm:$0xff]
        %v453 = vld [vmem:[%s1 + $0x680] sm:$0xff]
        %v454 = vld [vmem:[%s1 + $0x688] sm:$0xff]
        %v455 = vld [vmem:[%s1 + $0x690] sm:$0xff]
        %v456 = vld [vmem:[%s1 + $0x698] sm:$0xff]
        %v457 = vld [vmem:[%s1 + $0x6a0] sm:$0xff]
        %v458 = vld [vmem:[%s1 + $0x6a8] sm:$0xff]
        %v459 = vld [vmem:[%s1 + $0x6b0] sm:$0xff]
        %v460 = vld [vmem:[%s1 + $0x6b8] sm:$0xff]
        %v461 = vld [vmem:[%s1 + $0x6c0] sm:$0xff]
        %v462 = vld [vmem:[%s1 + $0x6c8] sm:$0xff]
        %v463 = vld [vmem:[%s1 + $0x6d0] sm:$0xff]
        %v464 = vld [vmem:[%s1 + $0x6d8] sm:$0xff]
        %v465 = vld [vmem:[%s1 + $0x6e0] sm:$0xff]
        %v466 = vld [vmem:[%s1 + $0x6e8] sm:$0xff]
        %v467 = vld [vmem:[%s1 + $0x6f0] sm:$0xff]
        %v468 = vld [vmem:[%s1 + $0x6f8] sm:$0xff]
        %v469 = vld [vmem:[%s1 + $0x700] sm:$0xff]
        %v470 = vld [vmem:[%s1 + $0x708] sm:$0xff]
        %v471 = vld [vmem:[%s1 + $0x710] sm:$0xff]
        %v472 = vld [vmem:[%s1 + $0x718] sm:$0xff]
        %v473 = vld [vmem:[%s1 + $0x720] sm:$0xff]
        %v474 = vld [vmem:[%s1 + $0x728] sm:$0xff]
        %v475 = vld [vmem:[%s1 + $0x730] sm:$0xff]
        %v476 = vld [vmem:[%s1 + $0x738] sm:$0xff]
        %v477 = vld [vmem:[%s1 + $0x740] sm:$0xff]
        %v478 = vld [vmem:[%s1 + $0x748] sm:$0xff]
        %v479 = vld [vmem:[%s1 + $0x750] sm:$0xff]
        %v480 = vld [vmem:[%s1 + $0x758] sm:$0xff]
        %v481 = vld [vmem:[%s1 + $0x760] sm:$0xff]
        %v482 = vld [vmem:[%s1 + $0x768] sm:$0xff]
        %v483 = vld [vmem:[%s1 + $0x770] sm:$0xff]
        %v484 = vld [vmem:[%s1 + $0x778] sm:$0xff]
        %v485 = vld [vmem:[%s1 + $0x780] sm:$0xff]
        %v486 = vld [vmem:[%s1 + $0x788] sm:$0xff]
        %v487 = vld [vmem:[%s1 + $0x790] sm:$0xff]
        %v488 = vld [vmem:[%s1 + $0x798] sm:$0xff]
        %v489 = vld [vmem:[%s1 + $0x7a0] sm:$0xff]
        %v490 = vld [vmem:[%s1 + $0x7a8] sm:$0xff]
        %v491 = vld [vmem:[%s1 + $0x7b0] sm:$0xff]
        %v492 = vld [vmem:[%s1 + $0x7b8] sm:$0xff]
        %v493 = vld [vmem:[%s1 + $0x7c0] sm:$0xff]
        %v494 = vld [vmem:[%s1 + $0x7c8] sm:$0xff]
        %v495 = vld [vmem:[%s1 + $0x7d0] sm:$0xff]
        %v496 = vld [vmem:[%s1 + $0x7d8] sm:$0xff]
        %v497 = vld [vmem:[%s1 + $0x7e0] sm:$0xff]
        %v498 = vld [vmem:[%s1 + $0x7e8] sm:$0xff]
        %v499 = vld [vmem:[%s1 + $0x7f0] sm:$0xff]
        %v500 = vld [vmem:[%s1 + $0x7f8] sm:$0xff]
        %v501 = vld [vmem:[%s2] sm:$0xff]
        %v503 = vlaneseq
        %v504 = vshrl.u32 %v503, 7
        %v505 = vsub.s32 0, %v504
        %v506 = vrot.slane %v501, %v505
        %v507 = vlaneseq
        %v508 = vshrl.u32 %v507, 7
        %v509 = vsub.s32 1, %v508
        %v510 = vrot.slane %v501, %v509
        %v511 = vlaneseq
        %v512 = vshrl.u32 %v511, 7
        %v513 = vsub.s32 2, %v512
        %v514 = vrot.slane %v501, %v513
        %v515 = vlaneseq
        %v516 = vshrl.u32 %v515, 7
        %v517 = vsub.s32 3, %v516
        %v518 = vrot.slane %v501, %v517
        %v519 = vlaneseq
        %v520 = vshrl.u32 %v519, 7
        %v521 = vsub.s32 4, %v520
        %v522 = vrot.slane %v501, %v521
        %v523 = vlaneseq
        %v524 = vshrl.u32 %v523, 7
        %v525 = vsub.s32 5, %v524
        %v526 = vrot.slane %v501, %v525
        %v527 = vlaneseq
        %v528 = vshrl.u32 %v527, 7
        %v529 = vsub.s32 6, %v528
        %v530 = vrot.slane %v501, %v529
        %v531 = vlaneseq
        %v532 = vshrl.u32 %v531, 7
        %v533 = vsub.s32 7, %v532
        %v534 = vrot.slane %v501, %v533
        %543 = vmatprep.subr.mxu0 %v246
        %544 = vmatpush1.msra.mxu0 %v245
        %545 = vmatprep.subr.mxu0 %v254
        %546 = vmatpush1.msra.mxu0 %v253
        %547 = vmatprep.subr.mxu0 %v262
        %548 = vmatpush1.msra.mxu0 %v261
        %549 = vmatprep.subr.mxu0 %v270
        %550 = vmatpush1.msra.mxu0 %v269
        %551 = vmatprep.subr.mxu0 %v278
        %552 = vmatpush1.msra.mxu0 %v277
        %553 = vmatprep.subr.mxu0 %v286
        %554 = vmatpush1.msra.mxu0 %v285
        %555 = vmatprep.subr.mxu0 %v294
        %556 = vmatpush1.msra.mxu0 %v293
        %557 = vmatprep.subr.mxu0 %v302
        %558 = vmatpush1.msra.mxu0 %v301
        %559 = vmatprep.subr.mxu0 %v310
        %560 = vmatpush1.msra.mxu0 %v309
        %561 = vmatprep.subr.mxu0 %v318
        %562 = vmatpush1.msra.mxu0 %v317
        %563 = vmatprep.subr.mxu0 %v326
        %564 = vmatpush1.msra.mxu0 %v325
        %565 = vmatprep.subr.mxu0 %v334
        %566 = vmatpush1.msra.mxu0 %v333
        %567 = vmatprep.subr.mxu0 %v342
        %568 = vmatpush1.msra.mxu0 %v341
        %569 = vmatprep.subr.mxu0 %v350
        %570 = vmatpush1.msra.mxu0 %v349
        %571 = vmatprep.subr.mxu0 %v358
        %572 = vmatpush1.msra.mxu0 %v357
        %573 = vmatprep.subr.mxu0 %v366
        %574 = vmatpush1.msra.mxu0 %v365
        %575 = vmatprep.subr.mxu0 %v374
        %576 = vmatpush1.msra.mxu0 %v373
        %577 = vmatprep.subr.mxu0 %v382
        %578 = vmatpush1.msra.mxu0 %v381
        %579 = vmatprep.subr.mxu0 %v390
        %580 = vmatpush1.msra.mxu0 %v389
        %581 = vmatprep.subr.mxu0 %v398
        %582 = vmatpush1.msra.mxu0 %v397
        %583 = vmatprep.subr.mxu0 %v406
        %584 = vmatpush1.msra.mxu0 %v405
        %585 = vmatprep.subr.mxu0 %v414
        %586 = vmatpush1.msra.mxu0 %v413
        %587 = vmatprep.subr.mxu0 %v422
        %588 = vmatpush1.msra.mxu0 %v421
        %589 = vmatprep.subr.mxu0 %v430
        %590 = vmatpush1.msra.mxu0 %v429
        %591 = vmatprep.subr.mxu0 %v438
        %592 = vmatpush1.msra.mxu0 %v437
        %593 = vmatprep.subr.mxu0 %v446
        %594 = vmatpush1.msra.mxu0 %v445
        %595 = vmatprep.subr.mxu0 %v454
        %596 = vmatpush1.msra.mxu0 %v453
        %597 = vmatprep.subr.mxu0 %v462
        %598 = vmatpush1.msra.mxu0 %v461
        %599 = vmatprep.subr.mxu0 %v470
        %600 = vmatpush1.msra.mxu0 %v469
        %601 = vmatprep.subr.mxu0 %v478
        %602 = vmatpush1.msra.mxu0 %v477
        %603 = vmatprep.subr.mxu0 %v486
        %604 = vmatpush1.msra.mxu0 %v485
        %605 = vmatprep.subr.mxu0 %v494
        %606 = vmatpush1.msra.mxu0 %v493
        %607 = vmatprep.mubr.f32.mxu0 %v244
        %608 = vmatmul.mubr.f32.gmra.mrb[0].mxu0 %v243
        %v609 = vpop.f32.mrb[0].mxu0
        %v610 = vadd.f32 %v506, %v609
        %v611 = vpop.f32.mrb[0].mxu0
        %v612 = vadd.f32 %v510, %v611
        %613 = vdwg.mxu0
        %614 = vmatprep.subr.mxu0 %v248
        %615 = vmatpush1.msra.mxu0 %v247
        %616 = vmatprep.subr.mxu0 %v256
        %617 = vmatpush1.msra.mxu0 %v255
        %618 = vmatprep.subr.mxu0 %v264
        %619 = vmatpush1.msra.mxu0 %v263
        %620 = vmatprep.subr.mxu0 %v272
        %621 = vmatpush1.msra.mxu0 %v271
        %622 = vmatprep.subr.mxu0 %v280
        %623 = vmatpush1.msra.mxu0 %v279
        %624 = vmatprep.subr.mxu0 %v288
        %625 = vmatpush1.msra.mxu0 %v287
        %626 = vmatprep.subr.mxu0 %v296
        %627 = vmatpush1.msra.mxu0 %v295
        %628 = vmatprep.subr.mxu0 %v304
        %629 = vmatpush1.msra.mxu0 %v303
        %630 = vmatprep.subr.mxu0 %v312
        %631 = vmatpush1.msra.mxu0 %v311
        %632 = vmatprep.subr.mxu0 %v320
        %633 = vmatpush1.msra.mxu0 %v319
        %634 = vmatprep.subr.mxu0 %v328
        %635 = vmatpush1.msra.mxu0 %v327
        %636 = vmatprep.subr.mxu0 %v336
        %637 = vmatpush1.msra.mxu0 %v335
        %638 = vmatprep.subr.mxu0 %v344
        %639 = vmatpush1.msra.mxu0 %v343
        %640 = vmatprep.subr.mxu0 %v352
        %641 = vmatpush1.msra.mxu0 %v351
        %642 = vmatprep.subr.mxu0 %v360
        %643 = vmatpush1.msra.mxu0 %v359
        %644 = vmatprep.subr.mxu0 %v368
        %645 = vmatpush1.msra.mxu0 %v367
        %646 = vmatprep.subr.mxu0 %v376
        %647 = vmatpush1.msra.mxu0 %v375
        %648 = vmatprep.subr.mxu0 %v384
        %649 = vmatpush1.msra.mxu0 %v383
        %650 = vmatprep.subr.mxu0 %v392
        %651 = vmatpush1.msra.mxu0 %v391
        %652 = vmatprep.subr.mxu0 %v400
        %653 = vmatpush1.msra.mxu0 %v399
        %654 = vmatprep.subr.mxu0 %v408
        %655 = vmatpush1.msra.mxu0 %v407
        %656 = vmatprep.subr.mxu0 %v416
        %657 = vmatpush1.msra.mxu0 %v415
        %658 = vmatprep.subr.mxu0 %v424
        %659 = vmatpush1.msra.mxu0 %v423
        %660 = vmatprep.subr.mxu0 %v432
        %661 = vmatpush1.msra.mxu0 %v431
        %662 = vmatprep.subr.mxu0 %v440
        %663 = vmatpush1.msra.mxu0 %v439
        %664 = vmatprep.subr.mxu0 %v448
        %665 = vmatpush1.msra.mxu0 %v447
        %666 = vmatprep.subr.mxu0 %v456
        %667 = vmatpush1.msra.mxu0 %v455
        %668 = vmatprep.subr.mxu0 %v464
        %669 = vmatpush1.msra.mxu0 %v463
        %670 = vmatprep.subr.mxu0 %v472
        %671 = vmatpush1.msra.mxu0 %v471
        %672 = vmatprep.subr.mxu0 %v480
        %673 = vmatpush1.msra.mxu0 %v479
        %674 = vmatprep.subr.mxu0 %v488
        %675 = vmatpush1.msra.mxu0 %v487
        %676 = vmatprep.subr.mxu0 %v496
        %677 = vmatpush1.msra.mxu0 %v495
        %678 = vmatprep.mubr.f32.mxu0 %v244
        %679 = vmatmul.mubr.f32.gmra.mrb[0].mxu0 %v243
        %v680 = vpop.f32.mrb[0].mxu0
        %v681 = vadd.f32 %v514, %v680
        %v682 = vpop.f32.mrb[0].mxu0
        %v683 = vadd.f32 %v518, %v682
        %684 = vdwg.mxu0
        %685 = vmatprep.subr.mxu0 %v250
        %686 = vmatpush1.msra.mxu0 %v249
        %687 = vmatprep.subr.mxu0 %v258
        %688 = vmatpush1.msra.mxu0 %v257
        %689 = vmatprep.subr.mxu0 %v266
        %690 = vmatpush1.msra.mxu0 %v265
        %691 = vmatprep.subr.mxu0 %v274
        %692 = vmatpush1.msra.mxu0 %v273
        %693 = vmatprep.subr.mxu0 %v282
        %694 = vmatpush1.msra.mxu0 %v281
        %695 = vmatprep.subr.mxu0 %v290
        %696 = vmatpush1.msra.mxu0 %v289
        %697 = vmatprep.subr.mxu0 %v298
        %698 = vmatpush1.msra.mxu0 %v297
        %699 = vmatprep.subr.mxu0 %v306
        %700 = vmatpush1.msra.mxu0 %v305
        %701 = vmatprep.subr.mxu0 %v314
        %702 = vmatpush1.msra.mxu0 %v313
        %703 = vmatprep.subr.mxu0 %v322
        %704 = vmatpush1.msra.mxu0 %v321
        %705 = vmatprep.subr.mxu0 %v330
        %706 = vmatpush1.msra.mxu0 %v329
        %707 = vmatprep.subr.mxu0 %v338
        %708 = vmatpush1.msra.mxu0 %v337
        %709 = vmatprep.subr.mxu0 %v346
        %710 = vmatpush1.msra.mxu0 %v345
        %711 = vmatprep.subr.mxu0 %v354
        %712 = vmatpush1.msra.mxu0 %v353
        %713 = vmatprep.subr.mxu0 %v362
        %714 = vmatpush1.msra.mxu0 %v361
        %715 = vmatprep.subr.mxu0 %v370
        %716 = vmatpush1.msra.mxu0 %v369
        %717 = vmatprep.subr.mxu0 %v378
        %718 = vmatpush1.msra.mxu0 %v377
        %719 = vmatprep.subr.mxu0 %v386
        %720 = vmatpush1.msra.mxu0 %v385
        %721 = vmatprep.subr.mxu0 %v394
        %722 = vmatpush1.msra.mxu0 %v393
        %723 = vmatprep.subr.mxu0 %v402
        %724 = vmatpush1.msra.mxu0 %v401
        %725 = vmatprep.subr.mxu0 %v410
        %726 = vmatpush1.msra.mxu0 %v409
        %727 = vmatprep.subr.mxu0 %v418
        %728 = vmatpush1.msra.mxu0 %v417
        %729 = vmatprep.subr.mxu0 %v426
        %730 = vmatpush1.msra.mxu0 %v425
        %731 = vmatprep.subr.mxu0 %v434
        %732 = vmatpush1.msra.mxu0 %v433
        %733 = vmatprep.subr.mxu0 %v442
        %734 = vmatpush1.msra.mxu0 %v441
        %735 = vmatprep.subr.mxu0 %v450
        %736 = vmatpush1.msra.mxu0 %v449
        %737 = vmatprep.subr.mxu0 %v458
        %738 = vmatpush1.msra.mxu0 %v457
        %739 = vmatprep.subr.mxu0 %v466
        %740 = vmatpush1.msra.mxu0 %v465
        %741 = vmatprep.subr.mxu0 %v474
        %742 = vmatpush1.msra.mxu0 %v473
        %743 = vmatprep.subr.mxu0 %v482
        %744 = vmatpush1.msra.mxu0 %v481
        %745 = vmatprep.subr.mxu0 %v490
        %746 = vmatpush1.msra.mxu0 %v489
        %747 = vmatprep.subr.mxu0 %v498
        %748 = vmatpush1.msra.mxu0 %v497
        %749 = vmatprep.mubr.f32.mxu0 %v244
        %750 = vmatmul.mubr.f32.gmra.mrb[0].mxu0 %v243
        %v751 = vpop.f32.mrb[0].mxu0
        %v752 = vadd.f32 %v522, %v751
        %v753 = vpop.f32.mrb[0].mxu0
        %v754 = vadd.f32 %v526, %v753
        %755 = vdwg.mxu0
        %756 = vmatprep.subr.mxu0 %v252
        %757 = vmatpush1.msra.mxu0 %v251
        %758 = vmatprep.subr.mxu0 %v260
        %759 = vmatpush1.msra.mxu0 %v259
        %760 = vmatprep.subr.mxu0 %v268
        %761 = vmatpush1.msra.mxu0 %v267
        %762 = vmatprep.subr.mxu0 %v276
        %763 = vmatpush1.msra.mxu0 %v275
        %764 = vmatprep.subr.mxu0 %v284
        %765 = vmatpush1.msra.mxu0 %v283
        %766 = vmatprep.subr.mxu0 %v292
        %767 = vmatpush1.msra.mxu0 %v291
        %768 = vmatprep.subr.mxu0 %v300
        %769 = vmatpush1.msra.mxu0 %v299
        %770 = vmatprep.subr.mxu0 %v308
        %771 = vmatpush1.msra.mxu0 %v307
        %772 = vmatprep.subr.mxu0 %v316
        %773 = vmatpush1.msra.mxu0 %v315
        %774 = vmatprep.subr.mxu0 %v324
        %775 = vmatpush1.msra.mxu0 %v323
        %776 = vmatprep.subr.mxu0 %v332
        %777 = vmatpush1.msra.mxu0 %v331
        %778 = vmatprep.subr.mxu0 %v340
        %779 = vmatpush1.msra.mxu0 %v339
        %780 = vmatprep.subr.mxu0 %v348
        %781 = vmatpush1.msra.mxu0 %v347
        %782 = vmatprep.subr.mxu0 %v356
        %783 = vmatpush1.msra.mxu0 %v355
        %784 = vmatprep.subr.mxu0 %v364
        %785 = vmatpush1.msra.mxu0 %v363
        %786 = vmatprep.subr.mxu0 %v372
        %787 = vmatpush1.msra.mxu0 %v371
        %788 = vmatprep.subr.mxu0 %v380
        %789 = vmatpush1.msra.mxu0 %v379
        %790 = vmatprep.subr.mxu0 %v388
        %791 = vmatpush1.msra.mxu0 %v387
        %792 = vmatprep.subr.mxu0 %v396
        %793 = vmatpush1.msra.mxu0 %v395
        %794 = vmatprep.subr.mxu0 %v404
        %795 = vmatpush1.msra.mxu0 %v403
        %796 = vmatprep.subr.mxu0 %v412
        %797 = vmatpush1.msra.mxu0 %v411
        %798 = vmatprep.subr.mxu0 %v420
        %799 = vmatpush1.msra.mxu0 %v419
        %800 = vmatprep.subr.mxu0 %v428
        %801 = vmatpush1.msra.mxu0 %v427
        %802 = vmatprep.subr.mxu0 %v436
        %803 = vmatpush1.msra.mxu0 %v435
        %804 = vmatprep.subr.mxu0 %v444
        %805 = vmatpush1.msra.mxu0 %v443
        %806 = vmatprep.subr.mxu0 %v452
        %807 = vmatpush1.msra.mxu0 %v451
        %808 = vmatprep.subr.mxu0 %v460
        %809 = vmatpush1.msra.mxu0 %v459
        %810 = vmatprep.subr.mxu0 %v468
        %811 = vmatpush1.msra.mxu0 %v467
        %812 = vmatprep.subr.mxu0 %v476
        %813 = vmatpush1.msra.mxu0 %v475
        %814 = vmatprep.subr.mxu0 %v484
        %815 = vmatpush1.msra.mxu0 %v483
        %816 = vmatprep.subr.mxu0 %v492
        %817 = vmatpush1.msra.mxu0 %v491
        %818 = vmatprep.subr.mxu0 %v500
        %819 = vmatpush1.msra.mxu0 %v499
        %820 = vmatprep.mubr.f32.mxu0 %v244
        %821 = vmatmul.mubr.f32.gmra.mrb[0].mxu0 %v243
        %v822 = vpop.f32.mrb[0].mxu0
        %v823 = vadd.f32 %v530, %v822
        %v824 = vpop.f32.mrb[0].mxu0
        %v825 = vadd.f32 %v534, %v824
        %826 = vdwg.mxu0
        %v827 = vmax.f32 %v610, 0.0
        %v828 = vmax.f32 %v612, 0.0
        %v829 = vmax.f32 %v681, 0.0
        %v830 = vmax.f32 %v683, 0.0
        %v831 = vmax.f32 %v752, 0.0
        %v832 = vmax.f32 %v754, 0.0
        %v833 = vmax.f32 %v823, 0.0
        %v834 = vmax.f32 %v825, 0.0
        %v835 = vld [vmem:[%s3] sm:$0xff]
        %v836 = vld [vmem:[%s3 + $0x8] sm:$0xff]
        %v837 = vld [vmem:[%s3 + $0x10] sm:$0xff]
        %v838 = vld [vmem:[%s3 + $0x18] sm:$0xff]
        %v839 = vld [vmem:[%s3 + $0x20] sm:$0xff]
        %v840 = vld [vmem:[%s3 + $0x28] sm:$0xff]
        %v841 = vld [vmem:[%s3 + $0x30] sm:$0xff]
        %v842 = vld [vmem:[%s3 + $0x38] sm:$0xff]
        %v843 = vld [vmem:[%s3 + $0x40] sm:$0xff]
        %v844 = vld [vmem:[%s3 + $0x48] sm:$0xff]
        %v845 = vld [vmem:[%s3 + $0x50] sm:$0xff]
        %v846 = vld [vmem:[%s3 + $0x58] sm:$0xff]
        %v847 = vld [vmem:[%s3 + $0x60] sm:$0xff]
        %v848 = vld [vmem:[%s3 + $0x68] sm:$0xff]
        %v849 = vld [vmem:[%s3 + $0x70] sm:$0xff]
        %v850 = vld [vmem:[%s3 + $0x78] sm:$0xff]
        %v851 = vld [vmem:[%s3 + $0x80] sm:$0xff]
        %v852 = vld [vmem:[%s3 + $0x88] sm:$0xff]
        %v853 = vld [vmem:[%s3 + $0x90] sm:$0xff]
        %v854 = vld [vmem:[%s3 + $0x98] sm:$0xff]
        %v855 = vld [vmem:[%s3 + $0xa0] sm:$0xff]
        %v856 = vld [vmem:[%s3 + $0xa8] sm:$0xff]
        %v857 = vld [vmem:[%s3 + $0xb0] sm:$0xff]
        %v858 = vld [vmem:[%s3 + $0xb8] sm:$0xff]
        %v859 = vld [vmem:[%s3 + $0xc0] sm:$0xff]
        %v860 = vld [vmem:[%s3 + $0xc8] sm:$0xff]
        %v861 = vld [vmem:[%s3 + $0xd0] sm:$0xff]
        %v862 = vld [vmem:[%s3 + $0xd8] sm:$0xff]
        %v863 = vld [vmem:[%s3 + $0xe0] sm:$0xff]
        %v864 = vld [vmem:[%s3 + $0xe8] sm:$0xff]
        %v865 = vld [vmem:[%s3 + $0xf0] sm:$0xff]
        %v866 = vld [vmem:[%s3 + $0xf8] sm:$0xff]
        %v867 = vld [vmem:[%s3 + $0x100] sm:$0xff]
        %v868 = vld [vmem:[%s3 + $0x108] sm:$0xff]
        %v869 = vld [vmem:[%s3 + $0x110] sm:$0xff]
        %v870 = vld [vmem:[%s3 + $0x118] sm:$0xff]
        %v871 = vld [vmem:[%s3 + $0x120] sm:$0xff]
        %v872 = vld [vmem:[%s3 + $0x128] sm:$0xff]
        %v873 = vld [vmem:[%s3 + $0x130] sm:$0xff]
        %v874 = vld [vmem:[%s3 + $0x138] sm:$0xff]
        %v875 = vld [vmem:[%s3 + $0x140] sm:$0xff]
        %v876 = vld [vmem:[%s3 + $0x148] sm:$0xff]
        %v877 = vld [vmem:[%s3 + $0x150] sm:$0xff]
        %v878 = vld [vmem:[%s3 + $0x158] sm:$0xff]
        %v879 = vld [vmem:[%s3 + $0x160] sm:$0xff]
        %v880 = vld [vmem:[%s3 + $0x168] sm:$0xff]
        %v881 = vld [vmem:[%s3 + $0x170] sm:$0xff]
        %v882 = vld [vmem:[%s3 + $0x178] sm:$0xff]
        %v883 = vld [vmem:[%s3 + $0x180] sm:$0xff]
        %v884 = vld [vmem:[%s3 + $0x188] sm:$0xff]
        %v885 = vld [vmem:[%s3 + $0x190] sm:$0xff]
        %v886 = vld [vmem:[%s3 + $0x198] sm:$0xff]
        %v887 = vld [vmem:[%s3 + $0x1a0] sm:$0xff]
        %v888 = vld [vmem:[%s3 + $0x1a8] sm:$0xff]
        %v889 = vld [vmem:[%s3 + $0x1b0] sm:$0xff]
        %v890 = vld [vmem:[%s3 + $0x1b8] sm:$0xff]
        %v891 = vld [vmem:[%s3 + $0x1c0] sm:$0xff]
        %v892 = vld [vmem:[%s3 + $0x1c8] sm:$0xff]
        %v893 = vld [vmem:[%s3 + $0x1d0] sm:$0xff]
        %v894 = vld [vmem:[%s3 + $0x1d8] sm:$0xff]
        %v895 = vld [vmem:[%s3 + $0x1e0] sm:$0xff]
        %v896 = vld [vmem:[%s3 + $0x1e8] sm:$0xff]
        %v897 = vld [vmem:[%s3 + $0x1f0] sm:$0xff]
        %v898 = vld [vmem:[%s3 + $0x1f8] sm:$0xff]
        %v899 = vld [vmem:[%s3 + $0x200] sm:$0xff]
        %v900 = vld [vmem:[%s3 + $0x208] sm:$0xff]
        %v901 = vld [vmem:[%s3 + $0x210] sm:$0xff]
        %v902 = vld [vmem:[%s3 + $0x218] sm:$0xff]
        %v903 = vld [vmem:[%s3 + $0x220] sm:$0xff]
        %v904 = vld [vmem:[%s3 + $0x228] sm:$0xff]
        %v905 = vld [vmem:[%s3 + $0x230] sm:$0xff]
        %v906 = vld [vmem:[%s3 + $0x238] sm:$0xff]
        %v907 = vld [vmem:[%s3 + $0x240] sm:$0xff]
        %v908 = vld [vmem:[%s3 + $0x248] sm:$0xff]
        %v909 = vld [vmem:[%s3 + $0x250] sm:$0xff]
        %v910 = vld [vmem:[%s3 + $0x258] sm:$0xff]
        %v911 = vld [vmem:[%s3 + $0x260] sm:$0xff]
        %v912 = vld [vmem:[%s3 + $0x268] sm:$0xff]
        %v913 = vld [vmem:[%s3 + $0x270] sm:$0xff]
        %v914 = vld [vmem:[%s3 + $0x278] sm:$0xff]
        %v915 = vld [vmem:[%s3 + $0x280] sm:$0xff]
        %v916 = vld [vmem:[%s3 + $0x288] sm:$0xff]
        %v917 = vld [vmem:[%s3 + $0x290] sm:$0xff]
        %v918 = vld [vmem:[%s3 + $0x298] sm:$0xff]
        %v919 = vld [vmem:[%s3 + $0x2a0] sm:$0xff]
        %v920 = vld [vmem:[%s3 + $0x2a8] sm:$0xff]
        %v921 = vld [vmem:[%s3 + $0x2b0] sm:$0xff]
        %v922 = vld [vmem:[%s3 + $0x2b8] sm:$0xff]
        %v923 = vld [vmem:[%s3 + $0x2c0] sm:$0xff]
        %v924 = vld [vmem:[%s3 + $0x2c8] sm:$0xff]
        %v925 = vld [vmem:[%s3 + $0x2d0] sm:$0xff]
        %v926 = vld [vmem:[%s3 + $0x2d8] sm:$0xff]
        %v927 = vld [vmem:[%s3 + $0x2e0] sm:$0xff]
        %v928 = vld [vmem:[%s3 + $0x2e8] sm:$0xff]
        %v929 = vld [vmem:[%s3 + $0x2f0] sm:$0xff]
        %v930 = vld [vmem:[%s3 + $0x2f8] sm:$0xff]
        %v931 = vld [vmem:[%s3 + $0x300] sm:$0xff]
        %v932 = vld [vmem:[%s3 + $0x308] sm:$0xff]
        %v933 = vld [vmem:[%s3 + $0x310] sm:$0xff]
        %v934 = vld [vmem:[%s3 + $0x318] sm:$0xff]
        %v935 = vld [vmem:[%s3 + $0x320] sm:$0xff]
        %v936 = vld [vmem:[%s3 + $0x328] sm:$0xff]
        %v937 = vld [vmem:[%s3 + $0x330] sm:$0xff]
        %v938 = vld [vmem:[%s3 + $0x338] sm:$0xff]
        %v939 = vld [vmem:[%s3 + $0x340] sm:$0xff]
        %v940 = vld [vmem:[%s3 + $0x348] sm:$0xff]
        %v941 = vld [vmem:[%s3 + $0x350] sm:$0xff]
        %v942 = vld [vmem:[%s3 + $0x358] sm:$0xff]
        %v943 = vld [vmem:[%s3 + $0x360] sm:$0xff]
        %v944 = vld [vmem:[%s3 + $0x368] sm:$0xff]
        %v945 = vld [vmem:[%s3 + $0x370] sm:$0xff]
        %v946 = vld [vmem:[%s3 + $0x378] sm:$0xff]
        %v947 = vld [vmem:[%s3 + $0x380] sm:$0xff]
        %v948 = vld [vmem:[%s3 + $0x388] sm:$0xff]
        %v949 = vld [vmem:[%s3 + $0x390] sm:$0xff]
        %v950 = vld [vmem:[%s3 + $0x398] sm:$0xff]
        %v951 = vld [vmem:[%s3 + $0x3a0] sm:$0xff]
        %v952 = vld [vmem:[%s3 + $0x3a8] sm:$0xff]
        %v953 = vld [vmem:[%s3 + $0x3b0] sm:$0xff]
        %v954 = vld [vmem:[%s3 + $0x3b8] sm:$0xff]
        %v955 = vld [vmem:[%s3 + $0x3c0] sm:$0xff]
        %v956 = vld [vmem:[%s3 + $0x3c8] sm:$0xff]
        %v957 = vld [vmem:[%s3 + $0x3d0] sm:$0xff]
        %v958 = vld [vmem:[%s3 + $0x3d8] sm:$0xff]
        %v959 = vld [vmem:[%s3 + $0x3e0] sm:$0xff]
        %v960 = vld [vmem:[%s3 + $0x3e8] sm:$0xff]
        %v961 = vld [vmem:[%s3 + $0x3f0] sm:$0xff]
        %v962 = vld [vmem:[%s3 + $0x3f8] sm:$0xff]
        %v963 = vld [vmem:[%s4] sm:$0x1]
        %v965 = vlaneseq
        %v966 = vshrl.u32 %v965, 7
        %v967 = vsub.s32 0, %v966
        %v968 = vrot.slane %v963, %v967
        %970 = vmatprep.subr.mxu0 0.0
        %971 = vmatpush1.msra.mxu0 %v835
        %972 = vmatprep.subr.mxu0 0.0
        %973 = vmatpush1.msra.mxu0 %v836
        %974 = vmatprep.subr.mxu0 0.0
        %975 = vmatpush1.msra.mxu0 %v837
        %976 = vmatprep.subr.mxu0 0.0
        %977 = vmatpush1.msra.mxu0 %v838
        %978 = vmatprep.subr.mxu0 0.0
        %979 = vmatpush1.msra.mxu0 %v839
        %980 = vmatprep.subr.mxu0 0.0
        %981 = vmatpush1.msra.mxu0 %v840
        %982 = vmatprep.subr.mxu0 0.0
        %983 = vmatpush1.msra.mxu0 %v841
        %984 = vmatprep.subr.mxu0 0.0
        %985 = vmatpush1.msra.mxu0 %v842
        %986 = vmatprep.subr.mxu0 0.0
        %987 = vmatpush1.msra.mxu0 %v843
        %988 = vmatprep.subr.mxu0 0.0
        %989 = vmatpush1.msra.mxu0 %v844
        %990 = vmatprep.subr.mxu0 0.0
        %991 = vmatpush1.msra.mxu0 %v845
        %992 = vmatprep.subr.mxu0 0.0
        %993 = vmatpush1.msra.mxu0 %v846
        %994 = vmatprep.subr.mxu0 0.0
        %995 = vmatpush1.msra.mxu0 %v847
        %996 = vmatprep.subr.mxu0 0.0
        %997 = vmatpush1.msra.mxu0 %v848
        %998 = vmatprep.subr.mxu0 0.0
        %999 = vmatpush1.msra.mxu0 %v849
        %1000 = vmatprep.subr.mxu0 0.0
        %1001 = vmatpush1.msra.mxu0 %v850
        %1002 = vmatprep.subr.mxu0 0.0
        %1003 = vmatpush1.msra.mxu0 %v851
        %1004 = vmatprep.subr.mxu0 0.0
        %1005 = vmatpush1.msra.mxu0 %v852
        %1006 = vmatprep.subr.mxu0 0.0
        %1007 = vmatpush1.msra.mxu0 %v853
        %1008 = vmatprep.subr.mxu0 0.0
        %1009 = vmatpush1.msra.mxu0 %v854
        %1010 = vmatprep.subr.mxu0 0.0
        %1011 = vmatpush1.msra.mxu0 %v855
        %1012 = vmatprep.subr.mxu0 0.0
        %1013 = vmatpush1.msra.mxu0 %v856
        %1014 = vmatprep.subr.mxu0 0.0
        %1015 = vmatpush1.msra.mxu0 %v857
        %1016 = vmatprep.subr.mxu0 0.0
        %1017 = vmatpush1.msra.mxu0 %v858
        %1018 = vmatprep.subr.mxu0 0.0
        %1019 = vmatpush1.msra.mxu0 %v859
        %1020 = vmatprep.subr.mxu0 0.0
        %1021 = vmatpush1.msra.mxu0 %v860
        %1022 = vmatprep.subr.mxu0 0.0
        %1023 = vmatpush1.msra.mxu0 %v861
        %1024 = vmatprep.subr.mxu0 0.0
        %1025 = vmatpush1.msra.mxu0 %v862
        %1026 = vmatprep.subr.mxu0 0.0
        %1027 = vmatpush1.msra.mxu0 %v863
        %1028 = vmatprep.subr.mxu0 0.0
        %1029 = vmatpush1.msra.mxu0 %v864
        %1030 = vmatprep.subr.mxu0 0.0
        %1031 = vmatpush1.msra.mxu0 %v865
        %1032 = vmatprep.subr.mxu0 0.0
        %1033 = vmatpush1.msra.mxu0 %v866
        %1034 = vmatprep.mubr.f32.mxu0 %v828
        %1035 = vmatmul.mubr.f32.gmra.mrb[0].mxu0 %v827
        %v1036 = vpop.f32.mrb[0].mxu0
        %v1037 = vadd.f32 %v968, %v1036
        %v1038 = vpop.f32.mrb[0].mxu0
        %1039 = vdwg.mxu0
        %1040 = vmatprep.subr.mxu0 0.0
        %1041 = vmatpush1.msra.mxu0 %v867
        %1042 = vmatprep.subr.mxu0 0.0
        %1043 = vmatpush1.msra.mxu0 %v868
        %1044 = vmatprep.subr.mxu0 0.0
        %1045 = vmatpush1.msra.mxu0 %v869
        %1046 = vmatprep.subr.mxu0 0.0
        %1047 = vmatpush1.msra.mxu0 %v870
        %1048 = vmatprep.subr.mxu0 0.0
        %1049 = vmatpush1.msra.mxu0 %v871
        %1050 = vmatprep.subr.mxu0 0.0
        %1051 = vmatpush1.msra.mxu0 %v872
        %1052 = vmatprep.subr.mxu0 0.0
        %1053 = vmatpush1.msra.mxu0 %v873
        %1054 = vmatprep.subr.mxu0 0.0
        %1055 = vmatpush1.msra.mxu0 %v874
        %1056 = vmatprep.subr.mxu0 0.0
        %1057 = vmatpush1.msra.mxu0 %v875
        %1058 = vmatprep.subr.mxu0 0.0
        %1059 = vmatpush1.msra.mxu0 %v876
        %1060 = vmatprep.subr.mxu0 0.0
        %1061 = vmatpush1.msra.mxu0 %v877
        %1062 = vmatprep.subr.mxu0 0.0
        %1063 = vmatpush1.msra.mxu0 %v878
        %1064 = vmatprep.subr.mxu0 0.0
        %1065 = vmatpush1.msra.mxu0 %v879
        %1066 = vmatprep.subr.mxu0 0.0
        %1067 = vmatpush1.msra.mxu0 %v880
        %1068 = vmatprep.subr.mxu0 0.0
        %1069 = vmatpush1.msra.mxu0 %v881
        %1070 = vmatprep.subr.mxu0 0.0
        %1071 = vmatpush1.msra.mxu0 %v882
        %1072 = vmatprep.subr.mxu0 0.0
        %1073 = vmatpush1.msra.mxu0 %v883
        %1074 = vmatprep.subr.mxu0 0.0
        %1075 = vmatpush1.msra.mxu0 %v884
        %1076 = vmatprep.subr.mxu0 0.0
        %1077 = vmatpush1.msra.mxu0 %v885
        %1078 = vmatprep.subr.mxu0 0.0
        %1079 = vmatpush1.msra.mxu0 %v886
        %1080 = vmatprep.subr.mxu0 0.0
        %1081 = vmatpush1.msra.mxu0 %v887
        %1082 = vmatprep.subr.mxu0 0.0
        %1083 = vmatpush1.msra.mxu0 %v888
        %1084 = vmatprep.subr.mxu0 0.0
        %1085 = vmatpush1.msra.mxu0 %v889
        %1086 = vmatprep.subr.mxu0 0.0
        %1087 = vmatpush1.msra.mxu0 %v890
        %1088 = vmatprep.subr.mxu0 0.0
        %1089 = vmatpush1.msra.mxu0 %v891
        %1090 = vmatprep.subr.mxu0 0.0
        %1091 = vmatpush1.msra.mxu0 %v892
        %1092 = vmatprep.subr.mxu0 0.0
        %1093 = vmatpush1.msra.mxu0 %v893
        %1094 = vmatprep.subr.mxu0 0.0
        %1095 = vmatpush1.msra.mxu0 %v894
        %1096 = vmatprep.subr.mxu0 0.0
        %1097 = vmatpush1.msra.mxu0 %v895
        %1098 = vmatprep.subr.mxu0 0.0
        %1099 = vmatpush1.msra.mxu0 %v896
        %1100 = vmatprep.subr.mxu0 0.0
        %1101 = vmatpush1.msra.mxu0 %v897
        %1102 = vmatprep.subr.mxu0 0.0
        %1103 = vmatpush1.msra.mxu0 %v898
        %1104 = vmatprep.mubr.f32.mxu0 %v830
        %1105 = vmatmul.mubr.f32.gmra.mrb[0].mxu0 %v829
        %v1106 = vpop.f32.mrb[0].mxu0
        %v1107 = vadd.f32 %v1037, %v1106
        %v1108 = vpop.f32.mrb[0].mxu0
        %1109 = vdwg.mxu0
        %1110 = vmatprep.subr.mxu0 0.0
        %1111 = vmatpush1.msra.mxu0 %v899
        %1112 = vmatprep.subr.mxu0 0.0
        %1113 = vmatpush1.msra.mxu0 %v900
        %1114 = vmatprep.subr.mxu0 0.0
        %1115 = vmatpush1.msra.mxu0 %v901
        %1116 = vmatprep.subr.mxu0 0.0
        %1117 = vmatpush1.msra.mxu0 %v902
        %1118 = vmatprep.subr.mxu0 0.0
        %1119 = vmatpush1.msra.mxu0 %v903
        %1120 = vmatprep.subr.mxu0 0.0
        %1121 = vmatpush1.msra.mxu0 %v904
        %1122 = vmatprep.subr.mxu0 0.0
        %1123 = vmatpush1.msra.mxu0 %v905
        %1124 = vmatprep.subr.mxu0 0.0
        %1125 = vmatpush1.msra.mxu0 %v906
        %1126 = vmatprep.subr.mxu0 0.0
        %1127 = vmatpush1.msra.mxu0 %v907
        %1128 = vmatprep.subr.mxu0 0.0
        %1129 = vmatpush1.msra.mxu0 %v908
        %1130 = vmatprep.subr.mxu0 0.0
        %1131 = vmatpush1.msra.mxu0 %v909
        %1132 = vmatprep.subr.mxu0 0.0
        %1133 = vmatpush1.msra.mxu0 %v910
        %1134 = vmatprep.subr.mxu0 0.0
        %1135 = vmatpush1.msra.mxu0 %v911
        %1136 = vmatprep.subr.mxu0 0.0
        %1137 = vmatpush1.msra.mxu0 %v912
        %1138 = vmatprep.subr.mxu0 0.0
        %1139 = vmatpush1.msra.mxu0 %v913
        %1140 = vmatprep.subr.mxu0 0.0
        %1141 = vmatpush1.msra.mxu0 %v914
        %1142 = vmatprep.subr.mxu0 0.0
        %1143 = vmatpush1.msra.mxu0 %v915
        %1144 = vmatprep.subr.mxu0 0.0
        %1145 = vmatpush1.msra.mxu0 %v916
        %1146 = vmatprep.subr.mxu0 0.0
        %1147 = vmatpush1.msra.mxu0 %v917
        %1148 = vmatprep.subr.mxu0 0.0
        %1149 = vmatpush1.msra.mxu0 %v918
        %1150 = vmatprep.subr.mxu0 0.0
        %1151 = vmatpush1.msra.mxu0 %v919
        %1152 = vmatprep.subr.mxu0 0.0
        %1153 = vmatpush1.msra.mxu0 %v920
        %1154 = vmatprep.subr.mxu0 0.0
        %1155 = vmatpush1.msra.mxu0 %v921
        %1156 = vmatprep.subr.mxu0 0.0
        %1157 = vmatpush1.msra.mxu0 %v922
        %1158 = vmatprep.subr.mxu0 0.0
        %1159 = vmatpush1.msra.mxu0 %v923
        %1160 = vmatprep.subr.mxu0 0.0
        %1161 = vmatpush1.msra.mxu0 %v924
        %1162 = vmatprep.subr.mxu0 0.0
        %1163 = vmatpush1.msra.mxu0 %v925
        %1164 = vmatprep.subr.mxu0 0.0
        %1165 = vmatpush1.msra.mxu0 %v926
        %1166 = vmatprep.subr.mxu0 0.0
        %1167 = vmatpush1.msra.mxu0 %v927
        %1168 = vmatprep.subr.mxu0 0.0
        %1169 = vmatpush1.msra.mxu0 %v928
        %1170 = vmatprep.subr.mxu0 0.0
        %1171 = vmatpush1.msra.mxu0 %v929
        %1172 = vmatprep.subr.mxu0 0.0
        %1173 = vmatpush1.msra.mxu0 %v930
        %1174 = vmatprep.mubr.f32.mxu0 %v832
        %1175 = vmatmul.mubr.f32.gmra.mrb[0].mxu0 %v831
        %v1176 = vpop.f32.mrb[0].mxu0
        %v1177 = vadd.f32 %v1107, %v1176
        %v1178 = vpop.f32.mrb[0].mxu0
        %1179 = vdwg.mxu0
        %1180 = vmatprep.subr.mxu0 0.0
        %1181 = vmatpush1.msra.mxu0 %v931
        %1182 = vmatprep.subr.mxu0 0.0
        %1183 = vmatpush1.msra.mxu0 %v932
        %1184 = vmatprep.subr.mxu0 0.0
        %1185 = vmatpush1.msra.mxu0 %v933
        %1186 = vmatprep.subr.mxu0 0.0
        %1187 = vmatpush1.msra.mxu0 %v934
        %1188 = vmatprep.subr.mxu0 0.0
        %1189 = vmatpush1.msra.mxu0 %v935
        %1190 = vmatprep.subr.mxu0 0.0
        %1191 = vmatpush1.msra.mxu0 %v936
        %1192 = vmatprep.subr.mxu0 0.0
        %1193 = vmatpush1.msra.mxu0 %v937
        %1194 = vmatprep.subr.mxu0 0.0
        %1195 = vmatpush1.msra.mxu0 %v938
        %1196 = vmatprep.subr.mxu0 0.0
        %1197 = vmatpush1.msra.mxu0 %v939
        %1198 = vmatprep.subr.mxu0 0.0
        %1199 = vmatpush1.msra.mxu0 %v940
        %1200 = vmatprep.subr.mxu0 0.0
        %1201 = vmatpush1.msra.mxu0 %v941
        %1202 = vmatprep.subr.mxu0 0.0
        %1203 = vmatpush1.msra.mxu0 %v942
        %1204 = vmatprep.subr.mxu0 0.0
        %1205 = vmatpush1.msra.mxu0 %v943
        %1206 = vmatprep.subr.mxu0 0.0
        %1207 = vmatpush1.msra.mxu0 %v944
        %1208 = vmatprep.subr.mxu0 0.0
        %1209 = vmatpush1.msra.mxu0 %v945
        %1210 = vmatprep.subr.mxu0 0.0
        %1211 = vmatpush1.msra.mxu0 %v946
        %1212 = vmatprep.subr.mxu0 0.0
        %1213 = vmatpush1.msra.mxu0 %v947
        %1214 = vmatprep.subr.mxu0 0.0
        %1215 = vmatpush1.msra.mxu0 %v948
        %1216 = vmatprep.subr.mxu0 0.0
        %1217 = vmatpush1.msra.mxu0 %v949
        %1218 = vmatprep.subr.mxu0 0.0
        %1219 = vmatpush1.msra.mxu0 %v950
        %1220 = vmatprep.subr.mxu0 0.0
        %1221 = vmatpush1.msra.mxu0 %v951
        %1222 = vmatprep.subr.mxu0 0.0
        %1223 = vmatpush1.msra.mxu0 %v952
        %1224 = vmatprep.subr.mxu0 0.0
        %1225 = vmatpush1.msra.mxu0 %v953
        %1226 = vmatprep.subr.mxu0 0.0
        %1227 = vmatpush1.msra.mxu0 %v954
        %1228 = vmatprep.subr.mxu0 0.0
        %1229 = vmatpush1.msra.mxu0 %v955
        %1230 = vmatprep.subr.mxu0 0.0
        %1231 = vmatpush1.msra.mxu0 %v956
        %1232 = vmatprep.subr.mxu0 0.0
        %1233 = vmatpush1.msra.mxu0 %v957
        %1234 = vmatprep.subr.mxu0 0.0
        %1235 = vmatpush1.msra.mxu0 %v958
        %1236 = vmatprep.subr.mxu0 0.0
        %1237 = vmatpush1.msra.mxu0 %v959
        %1238 = vmatprep.subr.mxu0 0.0
        %1239 = vmatpush1.msra.mxu0 %v960
        %1240 = vmatprep.subr.mxu0 0.0
        %1241 = vmatpush1.msra.mxu0 %v961
        %1242 = vmatprep.subr.mxu0 0.0
        %1243 = vmatpush1.msra.mxu0 %v962
        %1244 = vmatprep.mubr.f32.mxu0 %v834
        %1245 = vmatmul.mubr.f32.gmra.mrb[0].mxu0 %v833
        %v1246 = vpop.f32.mrb[0].mxu0
        %v1247 = vadd.f32 %v1177, %v1246
        %v1248 = vpop.f32.mrb[0].mxu0
        %1249 = vdwg.mxu0
        %s1250 = scalar_lea.vmem %s229, %s237
        %1251 = vst [vmem:[%s1250] sm:$0xff] %v1247
      $region45: #{dqn_forward.1} parent=39 // loop_footer
        %s236 = sadd.s32 1, %s232
      $region46: #{dqn_forward.1} parent=39 // loop_footer_branch
        %231 = sbr.rel target = $region42
      $region47: #{dqn_forward.1} parent=39 // loop_exit
        _
      %s1252 = smul.u32 2, %s16
      %p1253 = scmp.lt.s32.totalorder %s1252, 3
      %s1254 = scalar_select %p1253, %s1252, 3
      %s1255 = smul.addr %s1254, 8
      %s1256 = scalar_lea.vmem %s5, %s1255
      // Predicated region
      $region48: #{dqn_forward.1} parent=39 // pred_check
        %p1257 = pneg %p144
      $region49: #{dqn_forward.1} parent=39 // pred_check_branch
        %1259 = sbr.rel (%p1257) target = $region51
      $region50: #{dqn_forward.1} parent=39 // pred_region
        %s1260 = smul.u32 2, %s16
      $region51: #{dqn_forward.1} parent=39 // pred_fallthru
        _
    $region40: #{dqn_forward.1} parent=5 // pred_fallthru
      _
    %p1261 = scmp.le.s32.totalorder 2, %s11
    // Predicated region
    $region52: #{dqn_forward.1} parent=5 // pred_check
      %p1262 = pneg %p1261
    $region53: #{dqn_forward.1} parent=5 // pred_check_branch
      %1264 = sbr.rel (%p1262) target = $region55
    $region54: #{dqn_forward.1} parent=5 // pred_region
      %s1265 = ssub.s32 %s11, 2
      // Predicated region
      $region56: #{dqn_forward.1} parent=54 // pred_check
        %p1266 = pneg %p150
      $region57: #{dqn_forward.1} parent=54 // pred_check_branch
        %1268 = sbr.rel (%p1266) target = $region59
      $region58: #{dqn_forward.1} parent=54 // pred_region
        %s1269 = smul.u32 2, %s17
        %p1270 = scmp.lt.s32.totalorder %s1269, 3
        %s1271 = scalar_select %p1270, %s1269, 3
        %s1272 = smul.addr %s1271, 8
        %s1273 = scalar_lea.vmem %s5, %s1272
      $region59: #{dqn_forward.1} parent=54 // pred_fallthru
        _
    $region55: #{dqn_forward.1} parent=5 // pred_fallthru
      _
  $region6: #{dqn_forward.1} parent=0 // loop_footer
    %s15 = sadd.s32 1, %s11
  $region7: #{dqn_forward.1} parent=0 // loop_footer_branch
    %10 = sbr.rel target = $region3
  $region8: #{dqn_forward.1} parent=0 // loop_exit
    _

</llo_original>
